<compile_context>
chip_gen: v7x
topology: tpu7x:2x2x1
jax: 0.10.0
libtpu: 0.0.40
codegen_flags: <defaults>
</compile_context>

<pallas_src>
import jax
import jax.numpy as jnp
from jax.experimental import pallas as pl
from jax.experimental.pallas import tpu as pltpu


def _h_sigmoid_kernel(x_ref, o_ref):
    # h_sigmoid(x) = relu6(x + 3) / 6, computed in f32 internally.
    x = x_ref[...].astype(jnp.float32)
    o_ref[...] = (jnp.clip(x + 3.0, 0.0, 6.0) * (1.0 / 6.0)).astype(o_ref.dtype)


def _h_sigmoid_jnp(x):
    # Plain-JAX path for the (<128-element) tail / tiny inputs.
    return (jnp.clip(x.astype(jnp.float32) + 3.0, 0.0, 6.0) * (1.0 / 6.0)).astype(x.dtype)


def _h_sigmoid_flat(xf, *, target_block_bytes):
    """Run the Pallas kernel on a 1-D array whose length is a multiple of 128."""
    n = xf.size
    dtype = xf.dtype
    itemsize = jnp.dtype(dtype).itemsize
    # Sublane multiple for packed dtypes: f32 -> 8, bf16/f16 -> 16, int8/fp8 -> 32.
    sublane = max(8, 32 // itemsize)

    # Widest lane-dense column count that divides n (copy-free reshape).
    cols = 128
    for c in (2048, 1024, 512, 256):
        if n % c == 0:
            cols = c
            break
    rows = n // cols
    x2d = jnp.reshape(xf, (rows, cols))

    # Target ~4 MiB blocks: per-step overhead (~0.35us) amortized for this
    # HBM-bandwidth-bound op, while double-buffered in+out stays well inside
    # every generation's VMEM once we pin vmem_limit_bytes below.
    total_bytes = n * itemsize
    tile_rows = max(sublane, target_block_bytes // (cols * itemsize))
    tile_rows = (tile_rows // sublane) * sublane

    # Grid-step floor: keep >=2/4/8 (even) steps for anything big enough so
    # (a) read/compute/write pipelines instead of serializing and (b) v7x's
    # two TensorCores both get work via the "parallel" grid axis.
    if total_bytes >= (4 << 20):
        min_steps = 8
    elif total_bytes >= (1 << 20):
        min_steps = 4
    elif total_bytes >= (256 << 10):
        min_steps = 2
    else:
        min_steps = 1
    if min_steps > 1:
        cap = (rows // min_steps) // sublane * sublane
        if cap >= sublane:
            tile_rows = min(tile_rows, cap)

    if tile_rows >= rows:
        tile_rows = rows  # single block; block shape == array dims is legal
    grid = (pl.cdiv(rows, tile_rows),)

    # Deliberate VMEM budget: ~5x block (in+out double buffers) + headroom.
    block_bytes = tile_rows * cols * itemsize
    vmem_limit = int(min(64 << 20, max(4 << 20, 5 * block_bytes + (1 << 20))))

    out2d = pl.pallas_call(
        _h_sigmoid_kernel,
        out_shape=jax.ShapeDtypeStruct((rows, cols), dtype),
        grid=grid,
        in_specs=[pl.BlockSpec((tile_rows, cols), lambda i: (i, 0))],
        out_specs=pl.BlockSpec((tile_rows, cols), lambda i: (i, 0)),
        input_output_aliases={0: 0},
        cost_estimate=pl.CostEstimate(
            flops=3 * n,
            transcendentals=0,
            bytes_accessed=2 * n * itemsize,
        ),
        compiler_params=pltpu.CompilerParams(
            dimension_semantics=("parallel",),
            vmem_limit_bytes=vmem_limit,
        ),
    )(x2d)
    return jnp.reshape(out2d, (-1,))


def h_sigmoid(x, *, target_block_bytes=4 * 1024 * 1024):
    """Elementwise hardsigmoid (relu6(x+3)/6) on a float array of any shape."""
    orig_shape = x.shape
    n = x.size
    if n == 0:
        return x

    xf = jnp.reshape(x, (-1,))
    prefix = (n // 128) * 128

    if prefix == n:
        out = _h_sigmoid_flat(xf, target_block_bytes=target_block_bytes)
    elif prefix == 0:
        # Fewer than 128 elements: not worth a kernel launch.
        out = _h_sigmoid_jnp(xf)
    else:
        # 128-aligned prefix through the kernel, tiny (<128) tail in plain jnp.
        head = _h_sigmoid_flat(xf[:prefix], target_block_bytes=target_block_bytes)
        tail = _h_sigmoid_jnp(xf[prefix:])
        out = jnp.concatenate([head, tail])

    return jnp.reshape(out, orig_shape)


def h_sigmoid_ref(x):
    return (jnp.clip(x.astype(jnp.float32) + 3.0, 0.0, 6.0) / 6.0).astype(x.dtype)


if __name__ == "__main__":
    key = jax.random.PRNGKey(0)

    # NCHW input consistent with typical conv feature maps.
    x = jax.random.normal(key, (2, 4, 16, 16), dtype=jnp.float32) * 4.0
    y_ref = h_sigmoid_ref(x)
    y = jax.block_until_ready(h_sigmoid(x))
    assert y.shape == x.shape and y.dtype == x.dtype
    assert jnp.allclose(y, y_ref, atol=1e-6, rtol=1e-6), "mismatch vs reference"

    # Odd-sized input exercising the prefix + jnp-tail path (no pad copy now).
    x2 = jax.random.normal(jax.random.PRNGKey(1), (2, 3, 7, 5), jnp.float32) * 4.0
    y2_ref = h_sigmoid_ref(x2)
    y2 = jax.block_until_ready(h_sigmoid(x2))
    assert y2.shape == x2.shape and y2.dtype == x2.dtype
    assert jnp.allclose(y2, y2_ref, atol=1e-6, rtol=1e-6), "odd-size mismatch"

    # Slightly larger f32 input exercising the multi-step (pipelined) grid.
    x3 = jax.random.normal(jax.random.PRNGKey(2), (4, 16, 32, 32), jnp.float32) * 4.0
    y3_ref = h_sigmoid_ref(x3)
    y3 = jax.block_until_ready(h_sigmoid(x3))
    assert jnp.allclose(y3, y3_ref, atol=1e-6, rtol=1e-6), "multi-step mismatch"

    # bf16 input exercising the in-kernel f32 upcast path.
    x4 = (jax.random.normal(jax.random.PRNGKey(3), (2, 8, 16, 16), jnp.float32) * 4.0
          ).astype(jnp.bfloat16)
    y4_ref = h_sigmoid_ref(x4)
    y4 = jax.block_until_ready(h_sigmoid(x4))
    assert y4.dtype == jnp.bfloat16
    assert jnp.allclose(y4.astype(jnp.float32), y4_ref.astype(jnp.float32),
                        atol=1e-2, rtol=1e-2), "bf16 mismatch"

    print("KERNEL_OK")
</pallas_src>

<mosaic_0001>
module attributes {stable_mosaic.version = 11 : i64} {
  func.func @_h_sigmoid_kernel(%arg0: i32, %arg1: memref<1x2048xf32, #tpu.memory_space<vmem>>, %arg2: memref<1x2048xf32, #tpu.memory_space<vmem>>) attributes {dimension_semantics = [#tpu.dimension_semantics<parallel>], iteration_bounds = array<i64: 1>, scalar_prefetch = 0 : i64, scratch_operands = 0 : i64, tpu.core_type = #tpu.core_type<tc>, window_params = [{transform_indices = @transform_0, window_bounds = array<i64: 1, 2048>}, {transform_indices = @transform_1, window_bounds = array<i64: 1, 2048>}]} {
    %c0 = arith.constant 0 : index
    %c0_0 = arith.constant 0 : index
    %0 = vector.load %arg1[%c0, %c0_0] : memref<1x2048xf32, #tpu.memory_space<vmem>>, vector<1x2048xf32>
    %cst = arith.constant 3.000000e+00 : f32
    %1 = vector.broadcast %cst : f32 to vector<1x2048xf32>
    %2 = arith.addf %0, %1 : vector<1x2048xf32>
    %cst_1 = arith.constant 0.000000e+00 : f32
    %cst_2 = arith.constant 6.000000e+00 : f32
    %3 = vector.broadcast %cst_1 : f32 to vector<1x2048xf32>
    %4 = arith.maximumf %3, %2 : vector<1x2048xf32>
    %5 = vector.broadcast %cst_2 : f32 to vector<1x2048xf32>
    %6 = arith.minimumf %5, %4 : vector<1x2048xf32>
    %cst_3 = arith.constant 0.166666672 : f32
    %7 = vector.broadcast %cst_3 : f32 to vector<1x2048xf32>
    %8 = arith.mulf %6, %7 : vector<1x2048xf32>
    %c0_4 = arith.constant 0 : index
    %c0_5 = arith.constant 0 : index
    %9 = vector.load %arg2[%c0_4, %c0_5] : memref<1x2048xf32, #tpu.memory_space<vmem>>, vector<1x2048xf32>
    tpu.vector_store %arg2[%c0_4, %c0_5], %8 {strides = array<i32>} : memref<1x2048xf32, #tpu.memory_space<vmem>>, vector<1x2048xf32>,
    return
  }
  func.func @transform_0(%arg0: i32) -> (i32, i32) {
    %c0_i32 = arith.constant 0 : i32
    %c0_i32_0 = arith.constant 0 : i32
    return %arg0, %c0_i32 : i32, i32
  }
  func.func @transform_1(%arg0: i32) -> (i32, i32) {
    %c0_i32 = arith.constant 0 : i32
    %c0_i32_0 = arith.constant 0 : i32
    return %arg0, %c0_i32 : i32, i32
  }
}

</mosaic_0001>

<llo_original>
// kernel: tpu_custom_call.1
$region0: #{tpu_custom_call.1}
  #allocation0 [shape = 'u32[]', space=smem, size = 0x4, offset = 0x4, fixed_abs, tag = 'smem constant byte address 0x4 - core index']
  #allocation1 [shape = 'u32[144,128]{1,0:T(1,128)}', space=vmem, size = 0x12000, scoped, tag = 'internal scratch']
  %s0 = inlined_call_operand.hbm [shape: f32[1,2048], index: 0, kind: input, shape index: {}, may-alias: {0,1}]
  %s1 = inlined_call_operand.hbm [shape: f32[1,2048], index: 1, kind: output, shape index: {}, may-alias: {0,1}]
  %s2 = sld [smem:[#allocation0]]
  $region18: #{tpu_custom_call.1} parent=0
    _
  %s4 = ssub.s32 1, %s2
  %s5 = scalar_select 0, %s4, %s2
  $region1: #{tpu_custom_call.1} parent=0
    #allocation2 [shape = 'u8[8192]{0}', space=vmem, size = 0x2000, scoped, tag = 'input window, operand 0, single buffered']
    #allocation3 [shape = 's32[1]{0}', space=sflag, size = 0x4, scoped, tag = 'scoped memory for tpu_custom_call.1']
    #allocation4 [shape = 's32[1]{0}', space=sflag, size = 0x4, scoped, tag = 'scoped memory for tpu_custom_call.1']
    #allocation5 [shape = 'u8[8192]{0}', space=vmem, size = 0x2000, scoped, tag = 'output window, operand 0, single buffered']
    %6 = vsyncpa [#allocation3], 0
    %7 = vsyncpa [#allocation4], 0
    // Predicated region
    $region2: #{tpu_custom_call.1} parent=1 // pred_check
      _
    $region3: #{tpu_custom_call.1} parent=1 // pred_check_branch
      %9 = sbr.rel (0) target = $region5
    $region4: #{tpu_custom_call.1} parent=1 // pred_region
      %s11 = ssub.s32 256, 256
      %12 = vsyncadd [#allocation3], %s11
      %s14 = sshll.u32 [#allocation2], 4
      %s15 = int_to_ptr.vmem [resolvable:$true] %s14
      %17 = dma.hbm_to_vmem [thread:$0]  %s0, 256, %s15, [#allocation3]
    $region5: #{tpu_custom_call.1} parent=1 // pred_fallthru
      _
    // Predicated region
    $region6: #{tpu_custom_call.1} parent=1 // pred_check
      _
    $region7: #{tpu_custom_call.1} parent=1 // pred_check_branch
      %19 = sbr.rel (0) target = $region9
    $region8: #{tpu_custom_call.1} parent=1 // pred_region
      %20 = dma.done [#allocation3], 256
    $region9: #{tpu_custom_call.1} parent=1 // pred_fallthru
      _
    %v21 = vld [vmem:[#allocation2] sm:$0xff]
    %v22 = vld [vmem:[#allocation2 + $0x8] sm:$0xff]
    %v23 = vadd.f32 %v21, 3.0
    %v24 = vadd.f32 %v22, 3.0
    %v25 = vmax.f32 %v23, 0.0
    %v26 = vmax.f32 %v24, 0.0
    %v27 = vmin.f32 %v25, 6.0
    %v28 = vmin.f32 %v26, 6.0
    %v29 = vmul.f32 %v27, 0.16666667
    %v30 = vmul.f32 %v28, 0.16666667
    %31 = vst [vmem:[#allocation5] sm:$0xff] %v29
    %32 = vst [vmem:[#allocation5 + $0x8] sm:$0xff] %v30
    // Predicated region
    $region10: #{tpu_custom_call.1} parent=1 // pred_check
      _
    $region11: #{tpu_custom_call.1} parent=1 // pred_check_branch
      %34 = sbr.rel (0) target = $region13
    $region12: #{tpu_custom_call.1} parent=1 // pred_region
      %s36 = ssub.s32 256, 256
      %37 = vsyncadd [#allocation4], %s36
      %s39 = sshll.u32 [#allocation5], 4
      %s40 = int_to_ptr.vmem [resolvable:$true] %s39
      %42 = dma.vmem_to_hbm [thread:$0]  %s40, 256, %s1, [#allocation4]
    $region13: #{tpu_custom_call.1} parent=1 // pred_fallthru
      _
    // Predicated region
    $region14: #{tpu_custom_call.1} parent=1 // pred_check
      _
    $region15: #{tpu_custom_call.1} parent=1 // pred_check_branch
      %44 = sbr.rel (0) target = $region17
    $region16: #{tpu_custom_call.1} parent=1 // pred_region
      %45 = dma.done [#allocation4], 256
    $region17: #{tpu_custom_call.1} parent=1 // pred_fallthru
      _
    %46 = vsyncpa [#allocation3], 1
    %47 = vsyncpa [#allocation4], 1

</llo_original>
